<compile_context>
chip_gen: v5e
topology: v5e:2x2
jax: 0.10.0
libtpu: 0.0.40
codegen_flags: <defaults>
</compile_context>

<pallas_src>
import functools

import jax
import jax.numpy as jnp
from jax.experimental import pallas as pl
from jax.experimental.pallas import tpu as pltpu

# Class weights from the module's __init__ (plain Python floats so the kernel
# does not capture any array constants).
W0, W1, W2 = 0.000265, 0.974169, 0.99341089

_VMEM_LIMIT = 48 * 1024 * 1024          # <= 64 MiB physical on v7x, far below v5e/v6e


def _round_down(x, m):
    return (x // m) * m


def _sublane_mult(dtype):
    return {4: 8, 2: 16, 1: 32}.get(jnp.dtype(dtype).itemsize, 8)


def _two_tensorcores():
    """Best-effort detection of 2-TensorCore chips (megacore v4/v5p, v7x)."""
    try:
        kind = jax.devices()[0].device_kind.lower()
    except Exception:  # pragma: no cover - defensive
        return False
    return any(tag in kind for tag in ("v4", "v5p", "v7"))


def _weighted_ce(x0, x1, x2, y0, y1, y2):
    """Per-pixel -sum_c w_c y_c log_softmax(x)_c, purely element-wise (VPU + EUP)."""
    m = jnp.maximum(jnp.maximum(x0, x1), x2)
    lse = jnp.log(jnp.exp(x0 - m) + jnp.exp(x1 - m) + jnp.exp(x2 - m)) + m
    wy0 = W0 * y0
    wy1 = W1 * y1
    wy2 = W2 * y2
    # -sum_c w_c y_c (x_c - lse)  ==  lse * sum_c w_c y_c  -  sum_c w_c y_c x_c
    return lse * (wy0 + wy1 + wy2) - (wy0 * x0 + wy1 * x1 + wy2 * x2)


# ----------------------------------------------------------------------------------
# Dense path: H*W % 128 == 0, inputs viewed zero-copy as (N, 3, R, 128).
# ----------------------------------------------------------------------------------
def _ce_kernel_dense(det_ref, lab_ref, out_ref, *, rows_valid, tr, tiles_per_split,
                     need_mask):
    """det_ref/lab_ref: (1, 3, TR, 128); out_ref: (1, 1, OR, 128) resident accumulator."""
    p = pl.program_id(1)          # parallel split of the row-tile axis (v7x only)
    j = pl.program_id(2)          # reduction (row-tile) index within the split

    @pl.when(j == 0)
    def _():
        out_ref[...] = jnp.zeros_like(out_ref)

    x0 = det_ref[0, 0, :, :].astype(jnp.float32)
    x1 = det_ref[0, 1, :, :].astype(jnp.float32)
    x2 = det_ref[0, 2, :, :].astype(jnp.float32)
    y0 = lab_ref[0, 0, :, :].astype(jnp.float32)
    y1 = lab_ref[0, 1, :, :].astype(jnp.float32)
    y2 = lab_ref[0, 2, :, :].astype(jnp.float32)
    contrib = _weighted_ce(x0, x1, x2, y0, y1, y2)          # (TR, 128)

    if tr % 8 == 0:
        # Collapse (TR,128) -> (8,128): pure vreg-wise adds, no relayout.
        def fold(c):
            return jnp.sum(c.reshape(tr // 8, 8, 128), axis=0)
    else:
        # Tiny image: TR == R < 8, output block is (1, 1, TR, 128).
        def fold(c):
            return c

    if not need_mask:
        out_ref[0, 0] += fold(contrib)
    else:
        # Only the globally-last row tile can contain rows past R (partial block
        # reads garbage there); interior tiles skip the iota/compare/where.
        row_start = (p * tiles_per_split + j) * tr
        is_partial = row_start + tr > rows_valid

        @pl.when(jnp.logical_not(is_partial))
        def _():
            out_ref[0, 0] += fold(contrib)

        @pl.when(is_partial)
        def _():
            rows = jax.lax.broadcasted_iota(jnp.int32, (tr, 128), 0) + row_start
            # where() (select) keeps inf/NaN garbage from the OOB rows out of the sum.
            out_ref[0, 0] += fold(jnp.where(rows < rows_valid, contrib, 0.0))


def _dense_path(det3, lab3, tr_max):
    """det3/lab3: (N, 3, HW) with HW % 128 == 0.  Returns (N, P, OR, 128) partial sums."""
    N, _, HW = det3.shape
    R = HW // 128
    det4 = det3.reshape(N, 3, R, 128)          # zero-copy view
    lab4 = lab3.reshape(N, 3, R, 128)

    sub = max(_sublane_mult(det3.dtype), _sublane_mult(lab3.dtype))
    if R >= sub:
        TR = min(_round_down(R, sub), max(sub, _round_down(tr_max, sub)))
    else:
        TR = R                                  # tiny image: single full-extent tile
    JT = pl.cdiv(R, TR)                         # row tiles per image
    need_mask = (R % TR) != 0                   # only the last tile is partial

    # Split the reduction axis across the two TensorCores only when it is free
    # (2-TC chip, even split -> no masked over-split tiles, no index clamping).
    P = 2 if (_two_tensorcores() and JT >= 2 and JT % 2 == 0) else 1
    JP = JT // P

    out_rows = 8 if TR % 8 == 0 else TR

    kernel = functools.partial(_ce_kernel_dense, rows_valid=R, tr=TR,
                               tiles_per_split=JP, need_mask=need_mask)

    def in_map(n, p, j):
        return (n, 0, p * JP + j, 0)

    # TODO(synk): pipeline_mode=pl.Buffered(3) on the in_specs is a further option on
    # v7x if DMA latency is still exposed at this tile size.
    return pl.pallas_call(
        kernel,
        out_shape=jax.ShapeDtypeStruct((N, P, out_rows, 128), jnp.float32),
        grid_spec=pltpu.PrefetchScalarGridSpec(
            num_scalar_prefetch=0,
            grid=(N, P, JP),
            in_specs=[
                pl.BlockSpec((1, 3, TR, 128), in_map),
                pl.BlockSpec((1, 3, TR, 128), in_map),
            ],
            out_specs=pl.BlockSpec((1, 1, out_rows, 128), lambda n, p, j: (n, p, 0, 0)),
        ),
        compiler_params=pltpu.CompilerParams(
            dimension_semantics=("parallel", "parallel", "arbitrary"),
            vmem_limit_bytes=_VMEM_LIMIT,
        ),
    )(det4, lab4)


# ----------------------------------------------------------------------------------
# Flat path: H*W % 128 != 0.  No pad copy: stream (1, 3, TL) blocks of the zero-copy
# (N, 3, HW) view and mask the lane tail with a flat element index inside the kernel.
# Slightly lower vreg utilization than the dense path, but 1x HBM traffic.
# ----------------------------------------------------------------------------------
def _ce_kernel_flat(det_ref, lab_ref, out_ref, *, hw_valid, tl, has_tail):
    """det_ref/lab_ref: (1, 3, TL); out_ref: (1, 1, TL) resident accumulator."""
    j = pl.program_id(1)

    @pl.when(j == 0)
    def _():
        out_ref[...] = jnp.zeros_like(out_ref)

    x0 = det_ref[0, 0:1, :].astype(jnp.float32)          # (1, TL)
    x1 = det_ref[0, 1:2, :].astype(jnp.float32)
    x2 = det_ref[0, 2:3, :].astype(jnp.float32)
    y0 = lab_ref[0, 0:1, :].astype(jnp.float32)
    y1 = lab_ref[0, 1:2, :].astype(jnp.float32)
    y2 = lab_ref[0, 2:3, :].astype(jnp.float32)
    contrib = _weighted_ce(x0, x1, x2, y0, y1, y2)       # (1, TL)

    if not has_tail:
        out_ref[0] += contrib
    else:
        last = pl.num_programs(1) - 1

        @pl.when(j < last)
        def _():
            out_ref[0] += contrib

        @pl.when(j == last)
        def _():
            # Flat-element lane mask for the <=TL-1 element tail of the image.
            col = jax.lax.broadcasted_iota(jnp.int32, (1, tl), 1) + j * tl
            out_ref[0] += jnp.where(col < hw_valid, contrib, 0.0)


def _flat_path(det3, lab3, tl_max):
    """det3/lab3: (N, 3, HW) with HW % 128 != 0.  Returns (N, 1, TL) partial sums."""
    N, _, HW = det3.shape
    if HW >= 128:
        TL = min(_round_down(HW, 128), max(128, _round_down(tl_max, 128)))
    else:
        TL = HW                                 # tiny image: single full-extent block
    JL = pl.cdiv(HW, TL)
    has_tail = (HW % TL) != 0

    kernel = functools.partial(_ce_kernel_flat, hw_valid=HW, tl=TL, has_tail=has_tail)

    return pl.pallas_call(
        kernel,
        out_shape=jax.ShapeDtypeStruct((N, 1, TL), jnp.float32),
        grid_spec=pltpu.PrefetchScalarGridSpec(
            num_scalar_prefetch=0,
            grid=(N, JL),
            in_specs=[
                pl.BlockSpec((1, 3, TL), lambda n, j: (n, 0, j)),
                pl.BlockSpec((1, 3, TL), lambda n, j: (n, 0, j)),
            ],
            out_specs=pl.BlockSpec((1, 1, TL), lambda n, j: (n, 0, 0)),
        ),
        compiler_params=pltpu.CompilerParams(
            dimension_semantics=("parallel", "arbitrary"),
            vmem_limit_bytes=_VMEM_LIMIT,
        ),
    )(det3, lab3)


# ----------------------------------------------------------------------------------
# Public entry point.
# ----------------------------------------------------------------------------------
@functools.partial(jax.jit, static_argnames=("tr_max", "tl_max"))
def loss_forward(det, label, tr_max=4096, tl_max=32768):
    """det, label: (N, 3, H, W).  Returns the scalar f32 loss.

    Inputs may be f32 or bf16; pass bf16 straight in (do NOT upcast in the caller —
    the kernels upcast per tile, and wrapper casts would add an HBM round trip).
    """
    N, C, H, W = det.shape
    assert C == 3, "Loss expects 3 classes on the channel axis"
    HW = H * W
    M = N * HW                                  # true number of rows for the mean

    # Zero-copy views; row ordering is irrelevant because the reduction is a mean.
    det3 = det.reshape(N, 3, HW)
    lab3 = label.reshape(N, 3, HW)

    if HW % 128 == 0:
        partials = _dense_path(det3, lab3, tr_max)
    else:
        # TODO(synk): for very small images one could additionally fold several
        # images per grid step to beat the ~0.35us/step pipeline overhead.
        partials = _flat_path(det3, lab3, tl_max)

    return jnp.sum(partials, dtype=jnp.float32) / jnp.float32(M)


def _reference_loss(det, label):
    """Pure-JAX reference matching CrossEntropyLoss(weight, 'mean') with soft targets."""
    w = jnp.array([W0, W1, W2], dtype=jnp.float32)
    x = jnp.transpose(det, (0, 3, 2, 1)).reshape(-1, 3).astype(jnp.float32)
    y = jnp.transpose(label, (0, 3, 2, 1)).reshape(-1, 3).astype(jnp.float32)
    logp = jax.nn.log_softmax(x, axis=-1)
    return jnp.mean(-jnp.sum(w[None, :] * y * logp, axis=-1))


if __name__ == "__main__":
    key = jax.random.PRNGKey(0)

    # Case 1: 16x16 spatial (HW=256 -> dense path, single tiny full-extent tile).
    # Case 2: ragged 40x40 (HW=1600 -> flat path, in-kernel lane-tail mask, NO pad copy).
    # Case 3: 40x128 with tr_max=16 -> multi-tile reduction + partial-row-tile mask.
    # Case 4: bf16 inputs streamed directly (16-row sublane packing).
    cases = [
        ((2, 3, 16, 16), jnp.float32, 4096),
        ((2, 3, 40, 40), jnp.float32, 4096),
        ((2, 3, 40, 128), jnp.float32, 16),
        ((2, 3, 16, 128), jnp.bfloat16, 4096),
    ]
    for shape, dtype, trm in cases:
        key, k1, k2 = jax.random.split(key, 3)
        det = jax.random.normal(k1, shape, dtype=jnp.float32)
        # Soft-label targets: probabilities over the class axis (axis=1).
        label = jax.nn.softmax(jax.random.normal(k2, shape, dtype=jnp.float32), axis=1)
        det = det.astype(dtype)
        label = label.astype(dtype)

        out = jax.block_until_ready(loss_forward(det, label, tr_max=trm))
        ref = jax.block_until_ready(_reference_loss(det, label))
        tol = 2e-2 if dtype == jnp.bfloat16 else 1e-5
        assert jnp.allclose(out, ref, rtol=tol, atol=tol), (shape, dtype, out, ref)

    print("KERNEL_OK")
</pallas_src>

<mosaic_0001>
module attributes {stable_mosaic.version = 11 : i64} {
  func.func @_ce_kernel_dense(%arg0: i32, %arg1: i32, %arg2: i32, %arg3: memref<1x3x2x128xf32, #tpu.memory_space<vmem>>, %arg4: memref<1x3x2x128xf32, #tpu.memory_space<vmem>>, %arg5: memref<1x1x2x128xf32, #tpu.memory_space<vmem>>) attributes {dimension_semantics = [#tpu.dimension_semantics<parallel>, #tpu.dimension_semantics<parallel>, #tpu.dimension_semantics<arbitrary>], iteration_bounds = array<i64: 2, 1, 1>, scalar_prefetch = 0 : i64, scratch_operands = 0 : i64, tpu.core_type = #tpu.core_type<tc>, window_params = [{transform_indices = @transform_0, window_bounds = array<i64: 1, 3, 2, 128>}, {transform_indices = @transform_1, window_bounds = array<i64: 1, 3, 2, 128>}, {transform_indices = @transform_2, window_bounds = array<i64: 1, 1, 2, 128>}]} {
    %c0_i32 = arith.constant 0 : i32
    %0 = arith.cmpi eq, %arg2, %c0_i32 : i32
    %1 = arith.extui %0 : i1 to i32
    %c0_i32_0 = arith.constant 0 : i32
    %2 = arith.cmpi ne, %1, %c0_i32_0 : i32
    scf.if %2 {
      %cst_32 = arith.constant 0.000000e+00 : f32
      %48 = vector.broadcast %cst_32 : f32 to vector<1x1x2x128xf32>
      %c0_33 = arith.constant 0 : index
      %c0_34 = arith.constant 0 : index
      %c0_35 = arith.constant 0 : index
      %c0_36 = arith.constant 0 : index
      %49 = vector.load %arg5[%c0_33, %c0_34, %c0_35, %c0_36] : memref<1x1x2x128xf32, #tpu.memory_space<vmem>>, vector<1x1x2x128xf32>
      tpu.vector_store %arg5[%c0_33, %c0_34, %c0_35, %c0_36], %48 {strides = array<i32>} : memref<1x1x2x128xf32, #tpu.memory_space<vmem>>, vector<1x1x2x128xf32>,
    } else {
    }
    %c0 = arith.constant 0 : index
    %c0_1 = arith.constant 0 : index
    %c0_2 = arith.constant 0 : index
    %c0_3 = arith.constant 0 : index
    %3 = vector.load %arg3[%c0, %c0_1, %c0_2, %c0_3] : memref<1x3x2x128xf32, #tpu.memory_space<vmem>>, vector<1x1x2x128xf32>
    %4 = vector.shape_cast %3 : vector<1x1x2x128xf32> to vector<2x128xf32>
    %c0_4 = arith.constant 0 : index
    %c1 = arith.constant 1 : index
    %c0_5 = arith.constant 0 : index
    %c0_6 = arith.constant 0 : index
    %5 = vector.load %arg3[%c0_4, %c1, %c0_5, %c0_6] : memref<1x3x2x128xf32, #tpu.memory_space<vmem>>, vector<1x1x2x128xf32>
    %6 = vector.shape_cast %5 : vector<1x1x2x128xf32> to vector<2x128xf32>
    %c0_7 = arith.constant 0 : index
    %c2 = arith.constant 2 : index
    %c0_8 = arith.constant 0 : index
    %c0_9 = arith.constant 0 : index
    %7 = vector.load %arg3[%c0_7, %c2, %c0_8, %c0_9] : memref<1x3x2x128xf32, #tpu.memory_space<vmem>>, vector<1x1x2x128xf32>
    %8 = vector.shape_cast %7 : vector<1x1x2x128xf32> to vector<2x128xf32>
    %c0_10 = arith.constant 0 : index
    %c0_11 = arith.constant 0 : index
    %c0_12 = arith.constant 0 : index
    %c0_13 = arith.constant 0 : index
    %9 = vector.load %arg4[%c0_10, %c0_11, %c0_12, %c0_13] : memref<1x3x2x128xf32, #tpu.memory_space<vmem>>, vector<1x1x2x128xf32>
    %10 = vector.shape_cast %9 : vector<1x1x2x128xf32> to vector<2x128xf32>
    %c0_14 = arith.constant 0 : index
    %c1_15 = arith.constant 1 : index
    %c0_16 = arith.constant 0 : index
    %c0_17 = arith.constant 0 : index
    %11 = vector.load %arg4[%c0_14, %c1_15, %c0_16, %c0_17] : memref<1x3x2x128xf32, #tpu.memory_space<vmem>>, vector<1x1x2x128xf32>
    %12 = vector.shape_cast %11 : vector<1x1x2x128xf32> to vector<2x128xf32>
    %c0_18 = arith.constant 0 : index
    %c2_19 = arith.constant 2 : index
    %c0_20 = arith.constant 0 : index
    %c0_21 = arith.constant 0 : index
    %13 = vector.load %arg4[%c0_18, %c2_19, %c0_20, %c0_21] : memref<1x3x2x128xf32, #tpu.memory_space<vmem>>, vector<1x1x2x128xf32>
    %14 = vector.shape_cast %13 : vector<1x1x2x128xf32> to vector<2x128xf32>
    %15 = arith.maximumf %4, %6 : vector<2x128xf32>
    %16 = arith.maximumf %15, %8 : vector<2x128xf32>
    %17 = arith.subf %4, %16 : vector<2x128xf32>
    %18 = math.exp %17 : vector<2x128xf32>
    %19 = arith.subf %6, %16 : vector<2x128xf32>
    %20 = math.exp %19 : vector<2x128xf32>
    %21 = arith.addf %18, %20 : vector<2x128xf32>
    %22 = arith.subf %8, %16 : vector<2x128xf32>
    %23 = math.exp %22 : vector<2x128xf32>
    %24 = arith.addf %21, %23 : vector<2x128xf32>
    %25 = math.log %24 : vector<2x128xf32>
    %26 = arith.addf %25, %16 : vector<2x128xf32>
    %cst = arith.constant 2.650000e-04 : f32
    %27 = vector.broadcast %cst : f32 to vector<2x128xf32>
    %28 = arith.mulf %27, %10 : vector<2x128xf32>
    %cst_22 = arith.constant 9.741690e-01 : f32
    %29 = vector.broadcast %cst_22 : f32 to vector<2x128xf32>
    %30 = arith.mulf %29, %12 : vector<2x128xf32>
    %cst_23 = arith.constant 0.993410885 : f32
    %31 = vector.broadcast %cst_23 : f32 to vector<2x128xf32>
    %32 = arith.mulf %31, %14 : vector<2x128xf32>
    %33 = arith.addf %28, %30 : vector<2x128xf32>
    %34 = arith.addf %33, %32 : vector<2x128xf32>
    %35 = arith.mulf %26, %34 : vector<2x128xf32>
    %36 = arith.mulf %28, %4 : vector<2x128xf32>
    %37 = arith.mulf %30, %6 : vector<2x128xf32>
    %38 = arith.addf %36, %37 : vector<2x128xf32>
    %39 = arith.mulf %32, %8 : vector<2x128xf32>
    %40 = arith.addf %38, %39 : vector<2x128xf32>
    %41 = arith.subf %35, %40 : vector<2x128xf32>
    %c0_24 = arith.constant 0 : index
    %c0_25 = arith.constant 0 : index
    %c0_26 = arith.constant 0 : index
    %c0_27 = arith.constant 0 : index
    %42 = vector.load %arg5[%c0_24, %c0_25, %c0_26, %c0_27] : memref<1x1x2x128xf32, #tpu.memory_space<vmem>>, vector<1x1x2x128xf32>
    %43 = vector.shape_cast %42 : vector<1x1x2x128xf32> to vector<2x128xf32>
    %44 = arith.addf %43, %41 : vector<2x128xf32>
    %c0_28 = arith.constant 0 : index
    %c0_29 = arith.constant 0 : index
    %c0_30 = arith.constant 0 : index
    %c0_31 = arith.constant 0 : index
    %45 = vector.load %arg5[%c0_28, %c0_29, %c0_30, %c0_31] : memref<1x1x2x128xf32, #tpu.memory_space<vmem>>, vector<1x1x2x128xf32>
    %46 = vector.shape_cast %45 : vector<1x1x2x128xf32> to vector<2x128xf32>
    %47 = vector.shape_cast %44 : vector<2x128xf32> to vector<1x1x2x128xf32>
    tpu.vector_store %arg5[%c0_28, %c0_29, %c0_30, %c0_31], %47 {strides = array<i32>} : memref<1x1x2x128xf32, #tpu.memory_space<vmem>>, vector<1x1x2x128xf32>,
    return
  }
  func.func @transform_0(%arg0: i32, %arg1: i32, %arg2: i32) -> (i32, i32, i32, i32) {
    %c1_i32 = arith.constant 1 : i32
    %0 = arith.muli %arg1, %c1_i32 : i32
    %1 = arith.addi %0, %arg2 : i32
    %c0_i32 = arith.constant 0 : i32
    %c0_i32_0 = arith.constant 0 : i32
    %c0_i32_1 = arith.constant 0 : i32
    return %arg0, %c0_i32, %1, %c0_i32_0 : i32, i32, i32, i32
  }
  func.func @transform_1(%arg0: i32, %arg1: i32, %arg2: i32) -> (i32, i32, i32, i32) {
    %c1_i32 = arith.constant 1 : i32
    %0 = arith.muli %arg1, %c1_i32 : i32
    %1 = arith.addi %0, %arg2 : i32
    %c0_i32 = arith.constant 0 : i32
    %c0_i32_0 = arith.constant 0 : i32
    %c0_i32_1 = arith.constant 0 : i32
    return %arg0, %c0_i32, %1, %c0_i32_0 : i32, i32, i32, i32
  }
  func.func @transform_2(%arg0: i32, %arg1: i32, %arg2: i32) -> (i32, i32, i32, i32) {
    %c0_i32 = arith.constant 0 : i32
    %c0_i32_0 = arith.constant 0 : i32
    %c0_i32_1 = arith.constant 0 : i32
    return %arg0, %arg1, %c0_i32, %c0_i32_0 : i32, i32, i32, i32
  }
}

</mosaic_0001>

<llo_original>
// kernel: loss_forward.1
$region0: #{loss_forward.1}
  #allocation0 [shape = 'u32[]', space=smem, size = 0x4, offset = 0x4, fixed_abs, tag = 'smem constant byte address 0x4 - core index']
  #allocation1 [shape = 'u32[72,128]{1,0:T(1,128)}', space=vmem, size = 0x9000, scoped, tag = 'internal scratch']
  %s0 = inlined_call_operand.vmem [shape: f32[2,3,2,128], index: 0, kind: input, shape index: {}]
  %s1 = inlined_call_operand.vmem [shape: f32[2,3,2,128], index: 1, kind: input, shape index: {}]
  %s2 = inlined_call_operand.vmem [shape: f32[2,1,2,128], index: 2, kind: output, shape index: {}]
  %s3 = sld [smem:[#allocation0]]
  $region45: #{loss_forward.1} parent=0
    _
  %s5 = ssub.s32 1, %s3
  %s6 = scalar_select 0, %s5, %s3
  loop: start=0, step=1, limit=4
  $region2: #{loss_forward.1} parent=0 // loop_pre_header
    _
  $region3: #{loss_forward.1} parent=0 // loop_header
    %s8 = sphi 0, %s12
    %p9 = scmp.ge.s32.totalorder %s8, 4
    %s15 = sphi 0, %s34
    %s16 = sphi 0, %s30
    %s17 = sphi 0, %s26
    %s18 = sphi 0, %s15
    %s19 = sphi 0, %s16
    %s20 = sphi 0, %s17
    %s21 = sphi 0, %s18
    %s22 = sphi 0, %s19
    %s23 = sphi 0, %s20
    %s41 = sphi 0, %s43
    %s44 = sphi 0, %s41
    %s45 = sphi 0, %s44
    %s61 = sphi 0, %s45
    %s71 = sphi 0, %s73
    %s74 = sphi 0, %s71
    %s75 = sphi 0, %s74
    %s91 = sphi 0, %s75
    %s99 = sphi 0, %s101
    %s102 = sphi 0, %s99
    %s103 = sphi 0, %s102
    %s119 = sphi 0, %s103
  $region4: #{loss_forward.1} parent=0 // loop_header_branch
    %11 = sbr.rel (%p9) target = $region8
  $region5: #{loss_forward.1} parent=0 // loop_body
    %s13 = ssub.s32 %s8, 1
    %s14 = ssub.s32 %s8, 2
    %s24 = sadd.s32 1, %s17
    %p25 = scmp.ge.s32.totalorder %s24, 1
    %s26 = scalar_select %p25, 0, %s24
    %s27 = sadd.s32 1, %s16
    %s28 = scalar_select %p25, %s27, %s16
    %p29 = scmp.ge.s32.totalorder %s28, 1
    %s30 = scalar_select %p29, 0, %s28
    %s31 = sadd.s32 1, %s15
    %s32 = scalar_select %p29, %s31, %s15
    %p33 = scmp.ge.s32.totalorder %s32, 2
    %s34 = scalar_select %p33, 0, %s32
    %s35 = sadd.s32 %s16, %s17
    %s36 = sadd.s32 %s30, %s26
    %s37 = ssub.s32 %s15, %s34
    %s38 = ssub.s32 %s35, %s36
    %s39 = sor.u32 %s37, %s38
    %p40 = scmp.eq.s32.totalorder %s39, 0
    %s42 = sadd.s32 %s41, 1
    %s43 = scalar_select %p40, %s41, %s42
    %p46 = pneg %p40
    %p47 = scmp.eq.s32.totalorder %s8, 1
    %p48 = por %p46, %p47
    %p49 = scmp.ne.s32.totalorder %s41, %s44
    %p50 = scmp.eq.s32.totalorder %s8, 0
    %p51 = por %p49, %p50
    %p52 = scmp.ne.s32.totalorder %s41, %s44
    %p53 = scmp.eq.s32.totalorder %s13, 1
    %p54 = por %p52, %p53
    %p55 = scmp.ne.s32.totalorder %s44, %s45
    %p56 = scmp.eq.s32.totalorder %s13, 0
    %p57 = por %p55, %p56
    %p58 = scmp.ne.s32.totalorder %s44, %s45
    %p59 = scmp.eq.s32.totalorder %s14, 1
    %p60 = por %p58, %p59
    %p62 = scmp.ne.s32.totalorder %s45, %s61
    %p63 = scmp.eq.s32.totalorder %s14, 0
    %p64 = por %p62, %p63
    %s65 = sadd.s32 %s16, %s17
    %s66 = sadd.s32 %s30, %s26
    %s67 = ssub.s32 %s15, %s34
    %s68 = ssub.s32 %s65, %s66
    %s69 = sor.u32 %s67, %s68
    %p70 = scmp.eq.s32.totalorder %s69, 0
    %s72 = sadd.s32 %s71, 1
    %s73 = scalar_select %p70, %s71, %s72
    %p76 = pneg %p70
    %p77 = scmp.eq.s32.totalorder %s8, 1
    %p78 = por %p76, %p77
    %p79 = scmp.ne.s32.totalorder %s71, %s74
    %p80 = scmp.eq.s32.totalorder %s8, 0
    %p81 = por %p79, %p80
    %p82 = scmp.ne.s32.totalorder %s71, %s74
    %p83 = scmp.eq.s32.totalorder %s13, 1
    %p84 = por %p82, %p83
    %p85 = scmp.ne.s32.totalorder %s74, %s75
    %p86 = scmp.eq.s32.totalorder %s13, 0
    %p87 = por %p85, %p86
    %p88 = scmp.ne.s32.totalorder %s74, %s75
    %p89 = scmp.eq.s32.totalorder %s14, 1
    %p90 = por %p88, %p89
    %p92 = scmp.ne.s32.totalorder %s75, %s91
    %p93 = scmp.eq.s32.totalorder %s14, 0
    %p94 = por %p92, %p93
    %s95 = ssub.s32 %s15, %s34
    %s96 = ssub.s32 %s16, %s30
    %s97 = sor.u32 %s95, %s96
    %p98 = scmp.eq.s32.totalorder %s97, 0
    %s100 = sadd.s32 %s99, 1
    %s101 = scalar_select %p98, %s99, %s100
    %p104 = pneg %p98
    %p105 = scmp.eq.s32.totalorder %s8, 1
    %p106 = por %p104, %p105
    %p107 = scmp.ne.s32.totalorder %s99, %s102
    %p108 = scmp.eq.s32.totalorder %s8, 0
    %p109 = por %p107, %p108
    %p110 = scmp.ne.s32.totalorder %s99, %s102
    %p111 = scmp.eq.s32.totalorder %s13, 1
    %p112 = por %p110, %p111
    %p113 = scmp.ne.s32.totalorder %s102, %s103
    %p114 = scmp.eq.s32.totalorder %s13, 0
    %p115 = por %p113, %p114
    %p116 = scmp.ne.s32.totalorder %s102, %s103
    %p117 = scmp.eq.s32.totalorder %s14, 1
    %p118 = por %p116, %p117
    %p120 = scmp.ne.s32.totalorder %s103, %s119
    %p121 = scmp.eq.s32.totalorder %s14, 0
    %p122 = por %p120, %p121
    %p123 = scmp.le.s32.totalorder 1, %s8
    %p124 = scmp.lt.s32.totalorder %s8, 3
    %p125 = pnand %p123, %p124
    %p126 = pneg %p125
    // Predicated region
    $region9: #{loss_forward.1} parent=5 // pred_check
      _
    $region10: #{loss_forward.1} parent=5 // pred_check_branch
      %128 = sbr.rel (%p125) target = $region12
    $region11: #{loss_forward.1} parent=5 // pred_region
      %s129 = ssub.s32 %s8, 1
    $region12: #{loss_forward.1} parent=5 // pred_fallthru
      _
    %p130 = scmp.lt.s32.totalorder %s8, 2
    // Predicated region
    $region13: #{loss_forward.1} parent=5 // pred_check
      %p131 = pneg %p130
    $region14: #{loss_forward.1} parent=5 // pred_check_branch
      %133 = sbr.rel (%p131) target = $region16
    $region15: #{loss_forward.1} parent=5 // pred_region
      // Predicated region
      $region17: #{loss_forward.1} parent=15 // pred_check
        %p134 = pneg %p51
      $region18: #{loss_forward.1} parent=15 // pred_check_branch
        %136 = sbr.rel (%p134) target = $region20
      $region19: #{loss_forward.1} parent=15 // pred_region
        %s137 = sadd.s32 %s16, %s17
        %p138 = scmp.lt.s32.totalorder %s15, 1
        %s139 = scalar_select %p138, %s15, 1
        %p140 = scmp.lt.s32.totalorder %s137, 0
        %s141 = scalar_select %p140, %s137, 0
        %s142 = smul.addr %s139, 3
        %s143 = sadd.s32 %s141, %s142
        %s144 = smul.addr %s143, 2
        %s145 = scalar_lea.vmem %s0, %s144
        %s146 = sadd.s32 %s16, %s17
      $region20: #{loss_forward.1} parent=15 // pred_fallthru
        _
      // Predicated region
      $region21: #{loss_forward.1} parent=15 // pred_check
        %p147 = pneg %p81
      $region22: #{loss_forward.1} parent=15 // pred_check_branch
        %149 = sbr.rel (%p147) target = $region24
      $region23: #{loss_forward.1} parent=15 // pred_region
        %s150 = sadd.s32 %s16, %s17
        %p151 = scmp.lt.s32.totalorder %s15, 1
        %s152 = scalar_select %p151, %s15, 1
        %p153 = scmp.lt.s32.totalorder %s150, 0
        %s154 = scalar_select %p153, %s150, 0
        %s155 = smul.addr %s152, 3
        %s156 = sadd.s32 %s154, %s155
        %s157 = smul.addr %s156, 2
        %s158 = scalar_lea.vmem %s1, %s157
        %s159 = sadd.s32 %s16, %s17
      $region24: #{loss_forward.1} parent=15 // pred_fallthru
        _
    $region16: #{loss_forward.1} parent=5 // pred_fallthru
      _
    %p160 = scmp.le.s32.totalorder 1, %s8
    %p161 = scmp.lt.s32.totalorder %s8, 3
    %p162 = pnand %p160, %p161
    %p163 = pneg %p162
    // Predicated region
    $region25: #{loss_forward.1} parent=5 // pred_check
      _
    $region26: #{loss_forward.1} parent=5 // pred_check_branch
      %165 = sbr.rel (%p162) target = $region28
    $region27: #{loss_forward.1} parent=5 // pred_region
      %s166 = ssub.s32 %s8, 1
      %s167 = sadd.s32 %s19, %s20
      %p168 = scmp.lt.s32.totalorder %s18, 1
      %s169 = scalar_select %p168, %s18, 1
      %p170 = scmp.lt.s32.totalorder %s167, 0
      %s171 = scalar_select %p170, %s167, 0
      %s172 = smul.addr %s169, 3
      %s173 = sadd.s32 %s171, %s172
      %s174 = smul.addr %s173, 2
      %s175 = scalar_lea.vmem %s0, %s174
      %p176 = pneg %p57
      %p177 = pneg %p54
      %s178 = sadd.s32 %s19, %s20
      %p179 = scmp.lt.s32.totalorder %s18, 1
      %s180 = scalar_select %p179, %s18, 1
      %p181 = scmp.lt.s32.totalorder %s178, 0
      %s182 = scalar_select %p181, %s178, 0
      %s183 = smul.addr %s180, 3
      %s184 = sadd.s32 %s182, %s183
      %s185 = smul.addr %s184, 2
      %s186 = scalar_lea.vmem %s1, %s185
      %p187 = pneg %p87
      %p188 = pneg %p84
      %p189 = pneg %p115
      %p190 = pneg %p112
      %p191 = scmp.lt.s32.totalorder %s18, 1
      %s192 = scalar_select %p191, %s18, 1
      %p193 = scmp.lt.s32.totalorder %s19, 0
      %s194 = scalar_select %p193, %s19, 0
      %s195 = sadd.s32 %s194, %s192
      %s196 = smul.addr %s195, 2
      %s197 = scalar_lea.vmem %s2, %s196
      %s198 = sadd.s32 %s19, %s20
      %p199 = scmp.lt.s32.totalorder %s18, 1
      %s200 = scalar_select %p199, %s18, 1
      %p201 = scmp.lt.s32.totalorder %s198, 0
      %s202 = scalar_select %p201, %s198, 0
      %s203 = smul.addr %s200, 3
      %s204 = sadd.s32 %s202, %s203
      %s205 = smul.addr %s204, 2
      %s206 = scalar_lea.vmem %s0, %s205
      %s207 = sadd.s32 %s19, %s20
      %s208 = sadd.s32 %s19, %s20
      %p209 = scmp.lt.s32.totalorder %s18, 1
      %s210 = scalar_select %p209, %s18, 1
      %p211 = scmp.lt.s32.totalorder %s208, 0
      %s212 = scalar_select %p211, %s208, 0
      %s213 = smul.addr %s210, 3
      %s214 = sadd.s32 %s212, %s213
      %s215 = smul.addr %s214, 2
      %s216 = scalar_lea.vmem %s1, %s215
      %s217 = sadd.s32 %s19, %s20
      %p218 = scmp.lt.s32.totalorder %s18, 1
      %s219 = scalar_select %p218, %s18, 1
      %p220 = scmp.lt.s32.totalorder %s19, 0
      %s221 = scalar_select %p220, %s19, 0
      %s222 = sadd.s32 %s221, %s219
      %s223 = smul.addr %s222, 2
      %s224 = scalar_lea.vmem %s2, %s223
      %p225 = scmp.eq.s32.totalorder %s20, 0
      // Predicated region
      $region29: #{loss_forward.1} parent=27 // pred_check
        %p226 = pneg %p225
      $region30: #{loss_forward.1} parent=27 // pred_check_branch
        %228 = sbr.rel (%p226) target = $region32
      $region31: #{loss_forward.1} parent=27 // pred_region
        %229 = vst [vmem:[%s224] sm:$0x3] 0.0
      $region32: #{loss_forward.1} parent=27 // pred_fallthru
        _
      %v230 = vld [vmem:[%s206] sm:$0x3]
      %s231 = scalar_lea.vmem %s206, 2
      %v232 = vld [vmem:[%s231] sm:$0x3]
      %s233 = scalar_lea.vmem %s206, 4
      %v234 = vld [vmem:[%s233] sm:$0x3]
      %v235 = vld [vmem:[%s216] sm:$0x3]
      %s236 = scalar_lea.vmem %s216, 2
      %v237 = vld [vmem:[%s236] sm:$0x3]
      %s238 = scalar_lea.vmem %s216, 4
      %v239 = vld [vmem:[%s238] sm:$0x3]
      %v240 = vmax.f32 %v230, %v232
      %v241 = vmax.f32 %v240, %v234
      %v242 = vsub.f32 %v230, %v241
      %v243 = vmul.f32 %v242, 1.442695
      %v244 = vpow.pop %v243
      %v245 = vsub.f32 %v232, %v241
      %v246 = vmul.f32 %v245, 1.442695
      %v247 = vpow.pop %v246
      %v248 = vadd.f32 %v244, %v247
      %v249 = vsub.f32 %v234, %v241
      %v250 = vmul.f32 %v249, 1.442695
      %v251 = vpow.pop %v250
      %v252 = vadd.f32 %v248, %v251
      %v253 = vlog2.pop %v252
      %v254 = vmul.f32 %v253, 0.6931472
      %v255 = vadd.f32 %v254, %v241
      %v256 = vmul.f32 %v235, 0.000265
      %v257 = vmul.f32 %v237, 0.974169
      %v258 = vmul.f32 %v239, 0.9934109
      %v259 = vadd.f32 %v256, %v257
      %v260 = vadd.f32 %v259, %v258
      %v261 = vmul.f32 %v255, %v260
      %v262 = vmul.f32 %v256, %v230
      %v263 = vmul.f32 %v257, %v232
      %v264 = vadd.f32 %v262, %v263
      %v265 = vmul.f32 %v258, %v234
      %v266 = vadd.f32 %v264, %v265
      %v267 = vsub.f32 %v261, %v266
      %v268 = vld [vmem:[%s224] sm:$0x3]
      %v269 = vadd.f32 %v268, %v267
      %270 = vst [vmem:[%s224] sm:$0x3] %v269
      %p271 = scmp.lt.s32.totalorder %s18, 1
      %s272 = scalar_select %p271, %s18, 1
      %p273 = scmp.lt.s32.totalorder %s19, 0
      %s274 = scalar_select %p273, %s19, 0
      %s275 = sadd.s32 %s274, %s272
      %s276 = smul.addr %s275, 2
      %s277 = scalar_lea.vmem %s2, %s276
      // Predicated region
      $region33: #{loss_forward.1} parent=27 // pred_check
        %p278 = pneg %p112
      $region34: #{loss_forward.1} parent=27 // pred_check_branch
        %280 = sbr.rel (%p278) target = $region36
      $region35: #{loss_forward.1} parent=27 // pred_region
        _
      $region36: #{loss_forward.1} parent=27 // pred_fallthru
        _
    $region28: #{loss_forward.1} parent=5 // pred_fallthru
      _
    %p281 = scmp.le.s32.totalorder 2, %s8
    // Predicated region
    $region37: #{loss_forward.1} parent=5 // pred_check
      %p282 = pneg %p281
    $region38: #{loss_forward.1} parent=5 // pred_check_branch
      %284 = sbr.rel (%p282) target = $region40
    $region39: #{loss_forward.1} parent=5 // pred_region
      %s285 = ssub.s32 %s8, 2
      // Predicated region
      $region41: #{loss_forward.1} parent=39 // pred_check
        %p286 = pneg %p118
      $region42: #{loss_forward.1} parent=39 // pred_check_branch
        %288 = sbr.rel (%p286) target = $region44
      $region43: #{loss_forward.1} parent=39 // pred_region
        %p289 = scmp.lt.s32.totalorder %s21, 1
        %s290 = scalar_select %p289, %s21, 1
        %p291 = scmp.lt.s32.totalorder %s22, 0
        %s292 = scalar_select %p291, %s22, 0
        %s293 = sadd.s32 %s292, %s290
        %s294 = smul.addr %s293, 2
        %s295 = scalar_lea.vmem %s2, %s294
      $region44: #{loss_forward.1} parent=39 // pred_fallthru
        _
    $region40: #{loss_forward.1} parent=5 // pred_fallthru
      _
  $region6: #{loss_forward.1} parent=0 // loop_footer
    %s12 = sadd.s32 1, %s8
  $region7: #{loss_forward.1} parent=0 // loop_footer_branch
    %7 = sbr.rel target = $region3
  $region8: #{loss_forward.1} parent=0 // loop_exit
    _

</llo_original>
